<compile_context>
chip_gen: v5e
topology: v5e:2x2
jax: 0.10.0
libtpu: 0.0.40
codegen_flags: <defaults>
</compile_context>

<pallas_src>
import functools

import jax
import jax.numpy as jnp
from jax.experimental import pallas as pl
from jax.experimental.pallas import tpu as pltpu


def residual_kernel(x_ref, w_ref, b_ref, o_ref, *, eps, alpha, beta):
    x = x_ref[...].astype(jnp.float32)                  # (tm, H) f32 vector path
    H = x.shape[-1]
    inv_h = 1.0 / H                                     # Python constants: no per-row divides
    inv_hm1 = 1.0 / max(H - 1, 1)

    # --- LayerNormalization (torch .std(): unbiased / Bessel; eps added to std) ---
    mean = jnp.sum(x, axis=-1, keepdims=True) * inv_h
    centered = x - mean
    var = jnp.sum(centered * centered, axis=-1, keepdims=True) * inv_hm1
    inv_std = pl.reciprocal(jnp.sqrt(var) + eps, approx=True)   # EUP slot; frees VALU
    normed = alpha * (centered * inv_std) + beta

    # --- sub_layer: Linear(H, H) column slab. bf16 operands on the MXU, f32 acc. ---
    sub = jnp.dot(normed.astype(jnp.bfloat16), w_ref[...],
                  preferred_element_type=jnp.float32) + b_ref[...]

    # --- dropout (eval mode -> identity) + residual add ---
    # Re-read x from its resident VMEM buffer instead of keeping the f32 tile live
    # across the matmul; only the column slab this grid step produces is needed.
    # TODO(synk): training-mode dropout (p=0.5) would need pltpu.prng_random_bits masking.
    tn = o_ref.shape[-1]
    if tn == x_ref.shape[-1]:                           # single column tile (common case)
        x_res = x_ref[...].astype(jnp.float32)
    else:                                               # N-tiled weight: slice the slab
        j = pl.program_id(1)
        x_res = x_ref[:, pl.ds(pl.multiple_of(j * tn, tn), tn)].astype(jnp.float32)
    o_ref[...] = (x_res + sub).astype(o_ref.dtype)


def _vmem_capacity_bytes():
    try:
        cap = getattr(pltpu.get_tpu_info(), "vmem_capacity_bytes", None)
    except Exception:
        cap = None
    if not cap:
        cap = 64 * 1024 * 1024          # conservative default: v7x per-TensorCore VMEM
    return int(cap)


def _choose_tiles(rows, H, usable):
    """Pick (tm, tn, n_x_buf) from the per-generation usable-VMEM budget."""
    # Weight column tile tn: keep the full bf16 weight resident (1 buffer) if it fits
    # ~1/3 of the budget; otherwise stream (H, tn) slabs double-buffered under the MXU.
    w_full = H * H * 2
    if w_full <= usable // 3 or H < 256 or H % 128 != 0:
        tn = H
    else:
        tn = usable // (8 * H)                           # 2 buffers * H*tn*2B <= usable/2
        tn = max(128, (tn // 128) * 128)
        tn = min(tn, H)
        while tn > 128 and H % tn != 0:
            tn -= 128
        if H % tn != 0:
            tn = H
    n_col = H // tn
    w_bytes = (1 if n_col == 1 else 2) * H * tn * 2

    # Row tile tm: x pipeline buffers + out double buffer + ~4 live (tm, H) f32 temps.
    n_x_buf = 3 if H <= 512 else 2
    per_row = H * 4 * (n_x_buf + 2 + 4)
    tm = max(8, (usable - w_bytes) // per_row)
    tm = min(tm, rows, 1024)
    tm = max(8, (tm // 8) * 8)
    while tm > 8 and rows % tm != 0:
        tm -= 8
    if rows % tm != 0:                                   # pathological row count
        tm = rows
    # v7x megacore: keep the row-step count even so both TensorCores get equal work.
    steps = rows // tm
    if steps % 2 == 1 and tm >= 16 and tm % 16 == 0 and rows % (tm // 2) == 0:
        tm //= 2
    if n_x_buf == 3 and rows // tm < 4:                  # deep buffering pointless on tiny grids
        n_x_buf = 2
    return tm, tn, n_x_buf


def _build_call(kernel, rows, H, tm, tn, out_dtype, vmem_limit, n_x_buf,
                use_pipeline_mode):
    n_row, n_col = rows // tm, H // tn

    def spec(shape, imap, mode=None):
        if use_pipeline_mode and mode is not None:
            return pl.BlockSpec(shape, imap, pipeline_mode=mode)
        return pl.BlockSpec(shape, imap)

    x_mode = pl.Buffered(n_x_buf) if n_x_buf != 2 else None
    # Resident weight/bias: constant index map -> single buffer (2nd would waste VMEM).
    # TODO(synk): on v7x megacore, a VMEM_SHARED weight would avoid duplicating the
    # resident slab per TensorCore.
    w_mode = pl.Buffered(1) if n_col == 1 else None

    w_streams = 1 if n_col == 1 else n_row               # slabs re-streamed per row tile
    cost = pl.CostEstimate(
        flops=2 * rows * H * H + 8 * rows * H,
        transcendentals=2 * rows,
        bytes_accessed=2 * rows * H * 4 + w_streams * H * H * 2 + H * 4,
    )

    return pl.pallas_call(
        kernel,
        out_shape=jax.ShapeDtypeStruct((rows, H), out_dtype),
        grid_spec=pltpu.PrefetchScalarGridSpec(
            num_scalar_prefetch=0,
            grid=(n_row, n_col),
            in_specs=[
                spec((tm, H), lambda i, j: (i, 0), x_mode),   # x row tile (full H for LN)
                spec((H, tn), lambda i, j: (0, j), w_mode),   # bf16 weight slab / resident
                spec((1, tn), lambda i, j: (0, j), w_mode),   # bias slab
            ],
            out_specs=pl.BlockSpec((tm, tn), lambda i, j: (i, j)),
        ),
        compiler_params=pltpu.CompilerParams(
            dimension_semantics=("parallel", "parallel"),     # megacore split on v7x
            vmem_limit_bytes=vmem_limit,
        ),
        cost_estimate=cost,
    )


def residual_connection(x, w, b, *, eps=1e-5, alpha=1.0, beta=1.0):
    """x: (rows, H) float32; w: (H, H); b: (1, H). Returns x + (LayerNorm(x) @ w + b)."""
    rows, H = x.shape
    cap = _vmem_capacity_bytes()
    usable = int(cap * 0.75)                              # headroom for compiler scratch
    vmem_limit = min(int(cap * 0.9), 100 * 1024 * 1024)   # ~100 MiB v5e/v6e, <64 MiB v7x
    tm, tn, n_x_buf = _choose_tiles(rows, H, usable)

    kernel = functools.partial(residual_kernel, eps=eps, alpha=alpha, beta=beta)
    w_bf16 = w.astype(jnp.bfloat16)        # halve weight DMA/VMEM bytes; MXU runs bf16
    b_f32 = b.astype(jnp.float32)

    try:
        call = _build_call(kernel, rows, H, tm, tn, x.dtype, vmem_limit,
                           n_x_buf, use_pipeline_mode=True)
        return call(x, w_bf16, b_f32)
    except (TypeError, NotImplementedError):
        # pl.Buffered / pipeline_mode unsupported in this jax version -> default
        # double-buffering. Narrow catch: real VMEM/lowering errors propagate.
        call = _build_call(kernel, rows, H, tm, tn, x.dtype, vmem_limit,
                           n_x_buf, use_pipeline_mode=False)
        return call(x, w_bf16, b_f32)


def reference(x, w, b, *, eps=1e-5, alpha=1.0, beta=1.0):
    mean = jnp.mean(x, axis=-1, keepdims=True)
    c = x - mean
    std = jnp.sqrt(jnp.sum(c * c, axis=-1, keepdims=True) / (x.shape[-1] - 1))
    normed = alpha * c / (std + eps) + beta
    return x + (normed @ w + b)


if __name__ == "__main__":
    batch, seq, hidden = 2, 8, 128
    key = jax.random.PRNGKey(0)
    kx, kw, kb = jax.random.split(key, 3)

    x3 = jax.random.normal(kx, (batch, seq, hidden), dtype=jnp.float32)
    # Deterministic sub_layer (Linear) parameters.
    w = jax.random.normal(kw, (hidden, hidden), dtype=jnp.float32) * 0.02
    b = jax.random.normal(kb, (1, hidden), dtype=jnp.float32) * 0.02

    x = x3.reshape(batch * seq, hidden)            # layout: [rows, hidden]
    out = jax.block_until_ready(residual_connection(x, w, b))

    ref = reference(x, w, b)
    assert out.shape == (batch * seq, hidden)
    # bf16 MXU operands + approx reciprocal -> mixed-precision tolerance vs f32 reference.
    assert jnp.allclose(out, ref, atol=2e-2, rtol=2e-2), "mismatch vs reference"

    _ = out.reshape(batch, seq, hidden)            # restore [batch, seq, hidden]
    print("KERNEL_OK")
</pallas_src>

<mosaic_0001>
module attributes {stable_mosaic.version = 11 : i64} {
  func.func @residual_kernel(%arg0: i32, %arg1: i32, %arg2: memref<8x128xf32, #tpu.memory_space<vmem>>, %arg3: memref<128x128xbf16, #tpu.memory_space<vmem>>, %arg4: memref<1x128xf32, #tpu.memory_space<vmem>>, %arg5: memref<8x128xf32, #tpu.memory_space<vmem>>) attributes {dimension_semantics = [#tpu.dimension_semantics<parallel>, #tpu.dimension_semantics<parallel>], iteration_bounds = array<i64: 2, 1>, scalar_prefetch = 0 : i64, scratch_operands = 0 : i64, tpu.core_type = #tpu.core_type<tc>, window_params = [{transform_indices = @transform_0, window_bounds = array<i64: 8, 128>}, {pipeline_mode = #tpu.pipeline_mode<synchronous>, transform_indices = @transform_1, window_bounds = array<i64: 128, 128>}, {pipeline_mode = #tpu.pipeline_mode<synchronous>, transform_indices = @transform_2, window_bounds = array<i64: 1, 128>}, {transform_indices = @transform_3, window_bounds = array<i64: 8, 128>}]} {
    %c0 = arith.constant 0 : index
    %c0_0 = arith.constant 0 : index
    %0 = vector.load %arg2[%c0, %c0_0] : memref<8x128xf32, #tpu.memory_space<vmem>>, vector<8x128xf32>
    %cst = arith.constant dense<0.000000e+00> : vector<8xf32>
    %1 = vector.multi_reduction <add>, %0, %cst [1] : vector<8x128xf32> to vector<8xf32>
    %2 = vector.shape_cast %1 : vector<8xf32> to vector<8x1xf32>
    %cst_1 = arith.constant 7.812500e-03 : f32
    %3 = vector.broadcast %cst_1 : f32 to vector<8x1xf32>
    %4 = arith.mulf %2, %3 : vector<8x1xf32>
    %5 = vector.broadcast %4 : vector<8x1xf32> to vector<8x128xf32>
    %6 = arith.subf %0, %5 : vector<8x128xf32>
    %7 = arith.mulf %6, %6 : vector<8x128xf32>
    %cst_2 = arith.constant dense<0.000000e+00> : vector<8xf32>
    %8 = vector.multi_reduction <add>, %7, %cst_2 [1] : vector<8x128xf32> to vector<8xf32>
    %9 = vector.shape_cast %8 : vector<8xf32> to vector<8x1xf32>
    %cst_3 = arith.constant 0.00787401571 : f32
    %10 = vector.broadcast %cst_3 : f32 to vector<8x1xf32>
    %11 = arith.mulf %9, %10 : vector<8x1xf32>
    %12 = math.sqrt %11 : vector<8x1xf32>
    %cst_4 = arith.constant 9.99999974E-6 : f32
    %13 = vector.broadcast %cst_4 : f32 to vector<8x1xf32>
    %14 = arith.addf %12, %13 : vector<8x1xf32>
    %15 = tpu.reciprocal %14 {approx = true} : vector<8x1xf32> -> vector<8x1xf32>
    %16 = vector.broadcast %15 : vector<8x1xf32> to vector<8x128xf32>
    %17 = arith.mulf %6, %16 : vector<8x128xf32>
    %cst_5 = arith.constant 1.000000e+00 : f32
    %18 = vector.broadcast %cst_5 : f32 to vector<8x128xf32>
    %19 = arith.mulf %18, %17 : vector<8x128xf32>
    %cst_6 = arith.constant 1.000000e+00 : f32
    %20 = vector.broadcast %cst_6 : f32 to vector<8x128xf32>
    %21 = arith.addf %19, %20 : vector<8x128xf32>
    %22 = arith.truncf %21 : vector<8x128xf32> to vector<8x128xbf16>
    %c0_7 = arith.constant 0 : index
    %c0_8 = arith.constant 0 : index
    %23 = vector.load %arg3[%c0_7, %c0_8] : memref<128x128xbf16, #tpu.memory_space<vmem>>, vector<128x128xbf16>
    %cst_9 = arith.constant dense<0.000000e+00> : vector<8x128xf32>
    %24 = tpu.matmul %22, %23, %cst_9 {dimension_numbers = #tpu.dot_dimension_numbers<[1], [0], [0], [1], [0, 0, 1, 1], [], []>} : vector<8x128xbf16>, vector<128x128xbf16>, vector<8x128xf32> -> vector<8x128xf32>
    %c0_10 = arith.constant 0 : index
    %c0_11 = arith.constant 0 : index
    %25 = vector.load %arg4[%c0_10, %c0_11] : memref<1x128xf32, #tpu.memory_space<vmem>>, vector<1x128xf32>
    %26 = vector.broadcast %25 : vector<1x128xf32> to vector<8x128xf32>
    %27 = arith.addf %24, %26 : vector<8x128xf32>
    %c0_12 = arith.constant 0 : index
    %c0_13 = arith.constant 0 : index
    %28 = vector.load %arg2[%c0_12, %c0_13] : memref<8x128xf32, #tpu.memory_space<vmem>>, vector<8x128xf32>
    %29 = arith.addf %28, %27 : vector<8x128xf32>
    %c0_14 = arith.constant 0 : index
    %c0_15 = arith.constant 0 : index
    %30 = vector.load %arg5[%c0_14, %c0_15] : memref<8x128xf32, #tpu.memory_space<vmem>>, vector<8x128xf32>
    tpu.vector_store %arg5[%c0_14, %c0_15], %29 {strides = array<i32>} : memref<8x128xf32, #tpu.memory_space<vmem>>, vector<8x128xf32>,
    return
  }
  func.func @transform_0(%arg0: i32, %arg1: i32) -> (i32, i32) {
    %c0_i32 = arith.constant 0 : i32
    %c0_i32_0 = arith.constant 0 : i32
    return %arg0, %c0_i32 : i32, i32
  }
  func.func @transform_1(%arg0: i32, %arg1: i32) -> (i32, i32) {
    %c0_i32 = arith.constant 0 : i32
    %c0_i32_0 = arith.constant 0 : i32
    return %c0_i32, %arg1 : i32, i32
  }
  func.func @transform_2(%arg0: i32, %arg1: i32) -> (i32, i32) {
    %c0_i32 = arith.constant 0 : i32
    %c0_i32_0 = arith.constant 0 : i32
    return %c0_i32, %arg1 : i32, i32
  }
  func.func @transform_3(%arg0: i32, %arg1: i32) -> (i32, i32) {
    %c0_i32 = arith.constant 0 : i32
    return %arg0, %arg1 : i32, i32
  }
}

</mosaic_0001>

<llo_original>
// kernel: tpu_custom_call.1
$region0: #{tpu_custom_call.1}
  #allocation0 [shape = 'u32[]', space=smem, size = 0x4, offset = 0x4, fixed_abs, tag = 'smem constant byte address 0x4 - core index']
  #allocation1 [shape = 'u32[72,128]{1,0:T(1,128)}', space=vmem, size = 0x9000, scoped, tag = 'internal scratch']
  %s0 = inlined_call_operand.hbm [shape: f32[16,128], index: 0, kind: input, shape index: {}]
  %s1 = inlined_call_operand.hbm [shape: bf16[128,128], index: 1, kind: input, shape index: {}]
  %s2 = inlined_call_operand.vmem [shape: f32[1,128], index: 2, kind: input, shape index: {}]
  %s3 = inlined_call_operand.hbm [shape: f32[16,128], index: 3, kind: output, shape index: {}]
  %s4 = sld [smem:[#allocation0]]
  $region53: #{tpu_custom_call.1} parent=0
    _
  %s6 = ssub.s32 1, %s4
  %s7 = scalar_select 0, %s6, %s4
  $region1: #{tpu_custom_call.1} parent=0
    #allocation2 [shape = 'u8[8192]{0}', space=vmem, size = 0x2000, scoped, tag = 'input window, operand 0']
    #allocation3 [shape = 's32[2]{0}', space=sflag, size = 0x8, scoped, tag = 'scoped memory for tpu_custom_call.1']
    #allocation4 [shape = 's32[2]{0}', space=sflag, size = 0x8, scoped, tag = 'scoped memory for tpu_custom_call.1']
    #allocation5 [shape = 'u8[32768]{0}', space=vmem, size = 0x8000, scoped, tag = 'input window, operand 1, single buffered']
    #allocation6 [shape = 's32[1]{0}', space=sflag, size = 0x4, scoped, tag = 'scoped memory for tpu_custom_call.1']
    #allocation7 [shape = 'u8[8192]{0}', space=vmem, size = 0x2000, scoped, tag = 'output window, operand 0']
    %8 = vsyncpa [#allocation3], 0
    %s9 = scalar_lea.sflag [#allocation3], 1
    %10 = vsyncpa %s9, 0
    %11 = vsyncpa [#allocation6], 0
    %12 = vsyncpa [#allocation4], 0
    %s13 = scalar_lea.sflag [#allocation4], 1
    %14 = vsyncpa %s13, 0
    loop: start=0, step=1, limit=4
    $region2: #{tpu_custom_call.1} parent=1 // loop_pre_header
      _
    $region3: #{tpu_custom_call.1} parent=1 // loop_header
      %s16 = sphi 0, %s20
      %p17 = scmp.ge.s32.totalorder %s16, 4
      %s23 = sphi 0, %s35
      %s24 = sphi 0, %s31
      %s25 = sphi 0, %s23
      %s26 = sphi 0, %s24
      %s27 = sphi 0, %s25
      %s28 = sphi 0, %s26
      %s38 = sphi 0, %s40
      %s41 = sphi 0, %s38
      %s42 = sphi 0, %s41
      %s58 = sphi 0, %s42
      %s64 = sphi 0, %s66
      %s67 = sphi 0, %s64
      %s68 = sphi 0, %s67
      %s84 = sphi 0, %s68
      %s90 = sphi 0, %s92
      %s93 = sphi 0, %s90
      %s94 = sphi 0, %s93
      %s110 = sphi 0, %s94
      %s118 = sphi 0, %s120
      %s121 = sphi 0, %s118
      %s122 = sphi 0, %s121
      %s138 = sphi 0, %s122
    $region4: #{tpu_custom_call.1} parent=1 // loop_header_branch
      %19 = sbr.rel (%p17) target = $region8
    $region5: #{tpu_custom_call.1} parent=1 // loop_body
      %s21 = ssub.s32 %s16, 1
      %s22 = ssub.s32 %s16, 2
      %s29 = sadd.s32 1, %s24
      %p30 = scmp.ge.s32.totalorder %s29, 1
      %s31 = scalar_select %p30, 0, %s29
      %s32 = sadd.s32 1, %s23
      %s33 = scalar_select %p30, %s32, %s23
      %p34 = scmp.ge.s32.totalorder %s33, 2
      %s35 = scalar_select %p34, 0, %s33
      %s36 = ssub.s32 %s23, %s35
      %p37 = scmp.eq.s32.totalorder %s36, 0
      %s39 = sadd.s32 %s38, 1
      %s40 = scalar_select %p37, %s38, %s39
      %p43 = pneg %p37
      %p44 = scmp.eq.s32.totalorder %s16, 1
      %p45 = por %p43, %p44
      %p46 = scmp.ne.s32.totalorder %s38, %s41
      %p47 = scmp.eq.s32.totalorder %s16, 0
      %p48 = por %p46, %p47
      %p49 = scmp.ne.s32.totalorder %s38, %s41
      %p50 = scmp.eq.s32.totalorder %s21, 1
      %p51 = por %p49, %p50
      %p52 = scmp.ne.s32.totalorder %s41, %s42
      %p53 = scmp.eq.s32.totalorder %s21, 0
      %p54 = por %p52, %p53
      %p55 = scmp.ne.s32.totalorder %s41, %s42
      %p56 = scmp.eq.s32.totalorder %s22, 1
      %p57 = por %p55, %p56
      %p59 = scmp.ne.s32.totalorder %s42, %s58
      %p60 = scmp.eq.s32.totalorder %s22, 0
      %p61 = por %p59, %p60
      %s62 = ssub.s32 %s24, %s31
      %p63 = scmp.eq.s32.totalorder %s62, 0
      %s65 = sadd.s32 %s64, 1
      %s66 = scalar_select %p63, %s64, %s65
      %p69 = pneg %p63
      %p70 = scmp.eq.s32.totalorder %s16, 1
      %p71 = por %p69, %p70
      %p72 = scmp.ne.s32.totalorder %s64, %s67
      %p73 = scmp.eq.s32.totalorder %s16, 0
      %p74 = por %p72, %p73
      %p75 = scmp.ne.s32.totalorder %s64, %s67
      %p76 = scmp.eq.s32.totalorder %s21, 1
      %p77 = por %p75, %p76
      %p78 = scmp.ne.s32.totalorder %s67, %s68
      %p79 = scmp.eq.s32.totalorder %s21, 0
      %p80 = por %p78, %p79
      %p81 = scmp.ne.s32.totalorder %s67, %s68
      %p82 = scmp.eq.s32.totalorder %s22, 1
      %p83 = por %p81, %p82
      %p85 = scmp.ne.s32.totalorder %s68, %s84
      %p86 = scmp.eq.s32.totalorder %s22, 0
      %p87 = por %p85, %p86
      %s88 = ssub.s32 %s24, %s31
      %p89 = scmp.eq.s32.totalorder %s88, 0
      %s91 = sadd.s32 %s90, 1
      %s92 = scalar_select %p89, %s90, %s91
      %p95 = pneg %p89
      %p96 = scmp.eq.s32.totalorder %s16, 1
      %p97 = por %p95, %p96
      %p98 = scmp.ne.s32.totalorder %s90, %s93
      %p99 = scmp.eq.s32.totalorder %s16, 0
      %p100 = por %p98, %p99
      %p101 = scmp.ne.s32.totalorder %s90, %s93
      %p102 = scmp.eq.s32.totalorder %s21, 1
      %p103 = por %p101, %p102
      %p104 = scmp.ne.s32.totalorder %s93, %s94
      %p105 = scmp.eq.s32.totalorder %s21, 0
      %p106 = por %p104, %p105
      %p107 = scmp.ne.s32.totalorder %s93, %s94
      %p108 = scmp.eq.s32.totalorder %s22, 1
      %p109 = por %p107, %p108
      %p111 = scmp.ne.s32.totalorder %s94, %s110
      %p112 = scmp.eq.s32.totalorder %s22, 0
      %p113 = por %p111, %p112
      %s114 = ssub.s32 %s23, %s35
      %s115 = ssub.s32 %s24, %s31
      %s116 = sor.u32 %s114, %s115
      %p117 = scmp.eq.s32.totalorder %s116, 0
      %s119 = sadd.s32 %s118, 1
      %s120 = scalar_select %p117, %s118, %s119
      %p123 = pneg %p117
      %p124 = scmp.eq.s32.totalorder %s16, 1
      %p125 = por %p123, %p124
      %p126 = scmp.ne.s32.totalorder %s118, %s121
      %p127 = scmp.eq.s32.totalorder %s16, 0
      %p128 = por %p126, %p127
      %p129 = scmp.ne.s32.totalorder %s118, %s121
      %p130 = scmp.eq.s32.totalorder %s21, 1
      %p131 = por %p129, %p130
      %p132 = scmp.ne.s32.totalorder %s121, %s122
      %p133 = scmp.eq.s32.totalorder %s21, 0
      %p134 = por %p132, %p133
      %p135 = scmp.ne.s32.totalorder %s121, %s122
      %p136 = scmp.eq.s32.totalorder %s22, 1
      %p137 = por %p135, %p136
      %p139 = scmp.ne.s32.totalorder %s122, %s138
      %p140 = scmp.eq.s32.totalorder %s22, 0
      %p141 = por %p139, %p140
      %p142 = scmp.le.s32.totalorder 1, %s16
      %p143 = scmp.lt.s32.totalorder %s16, 3
      %p144 = pnand %p142, %p143
      %p145 = pneg %p144
      // Predicated region
      $region9: #{tpu_custom_call.1} parent=5 // pred_check
        _
      $region10: #{tpu_custom_call.1} parent=5 // pred_check_branch
        %147 = sbr.rel (%p144) target = $region12
      $region11: #{tpu_custom_call.1} parent=5 // pred_region
        %s148 = ssub.s32 %s16, 1
        // Predicated region
        $region13: #{tpu_custom_call.1} parent=11 // pred_check
          %p149 = pneg %p80
        $region14: #{tpu_custom_call.1} parent=11 // pred_check_branch
          %151 = sbr.rel (%p149) target = $region16
        $region15: #{tpu_custom_call.1} parent=11 // pred_region
          %153 = vsyncadd [#allocation6], 0
          %s154 = smul.addr %s26, 4
          %s155 = scalar_lea.hbm %s1, %s154
          %s156 = sshll.u32 %s155, 4
          %s157 = int_to_ptr.hbm [resolvable:$true] %s156
          %s158 = sshll.u32 [#allocation5], 4
          %s159 = int_to_ptr.vmem [resolvable:$true] %s158
          %164 = dma.hbm_to_vmem [thread:$0]  %s157, 1024, %s159, [#allocation6], 64, 64, 4
        $region16: #{tpu_custom_call.1} parent=11 // pred_fallthru
          _
        // Predicated region
        $region17: #{tpu_custom_call.1} parent=11 // pred_check
          %p165 = pneg %p106
        $region18: #{tpu_custom_call.1} parent=11 // pred_check_branch
          %167 = sbr.rel (%p165) target = $region20
        $region19: #{tpu_custom_call.1} parent=11 // pred_region
          %p168 = scmp.lt.s32.totalorder %s26, 0
          %s169 = scalar_select %p168, %s26, 0
          %s170 = scalar_lea.vmem %s2, %s169
        $region20: #{tpu_custom_call.1} parent=11 // pred_fallthru
          _
      $region12: #{tpu_custom_call.1} parent=5 // pred_fallthru
        _
      %p171 = scmp.lt.s32.totalorder %s16, 2
      // Predicated region
      $region21: #{tpu_custom_call.1} parent=5 // pred_check
        %p172 = pneg %p171
      $region22: #{tpu_custom_call.1} parent=5 // pred_check_branch
        %174 = sbr.rel (%p172) target = $region24
      $region23: #{tpu_custom_call.1} parent=5 // pred_region
        // Predicated region
        $region25: #{tpu_custom_call.1} parent=23 // pred_check
          %p175 = pneg %p48
        $region26: #{tpu_custom_call.1} parent=23 // pred_check_branch
          %177 = sbr.rel (%p175) target = $region28
        $region27: #{tpu_custom_call.1} parent=23 // pred_region
          %s178 = sand.u32 %s38, 1
          %s179 = scalar_lea.sflag [#allocation3], %s178
          %s180 = sand.u32 %s38, 1
          %s181 = smul.addr %s180, 8
          %s182 = scalar_lea.vmem [#allocation2], %s181
          %184 = vsyncadd %s179, 0
          %s185 = smul.addr %s23, 8
          %s186 = scalar_lea.hbm %s0, %s185
          %s188 = sshll.u32 %s186, 4
          %s189 = int_to_ptr.hbm [resolvable:$true] %s188
          %s190 = sshll.u32 %s182, 4
          %s191 = int_to_ptr.vmem [resolvable:$true] %s190
          %193 = dma.hbm_to_vmem [thread:$0]  %s189, 128, %s191, %s179
        $region28: #{tpu_custom_call.1} parent=23 // pred_fallthru
          _
      $region24: #{tpu_custom_call.1} parent=5 // pred_fallthru
        _
      %p194 = scmp.le.s32.totalorder 1, %s16
      %p195 = scmp.lt.s32.totalorder %s16, 3
      %p196 = pnand %p194, %p195
      %p197 = pneg %p196
      // Predicated region
      $region29: #{tpu_custom_call.1} parent=5 // pred_check
        _
      $region30: #{tpu_custom_call.1} parent=5 // pred_check_branch
        %199 = sbr.rel (%p196) target = $region32
      $region31: #{tpu_custom_call.1} parent=5 // pred_region
        %s200 = ssub.s32 %s16, 1
        %s201 = sand.u32 %s41, 1
        %s202 = scalar_lea.sflag [#allocation3], %s201
        %s203 = sand.u32 %s41, 1
        %s204 = smul.addr %s203, 8
        %s205 = scalar_lea.vmem [#allocation2], %s204
        // Predicated region
        $region33: #{tpu_custom_call.1} parent=31 // pred_check
          %p206 = pneg %p54
        $region34: #{tpu_custom_call.1} parent=31 // pred_check_branch
          %208 = sbr.rel (%p206) target = $region36
        $region35: #{tpu_custom_call.1} parent=31 // pred_region
          %210 = dma.done %s202, 128
        $region36: #{tpu_custom_call.1} parent=31 // pred_fallthru
          _
        // Predicated region
        $region37: #{tpu_custom_call.1} parent=31 // pred_check
          %p211 = pneg %p80
        $region38: #{tpu_custom_call.1} parent=31 // pred_check_branch
          %213 = sbr.rel (%p211) target = $region40
        $region39: #{tpu_custom_call.1} parent=31 // pred_region
          %215 = dma.done [#allocation6], 1024
        $region40: #{tpu_custom_call.1} parent=31 // pred_fallthru
          _
        %s216 = sand.u32 %s41, 1
        %s217 = scalar_lea.sflag [#allocation3], %s216
        %s218 = sand.u32 %s41, 1
        %s219 = smul.addr %s218, 8
        %s220 = scalar_lea.vmem [#allocation2], %s219
        %p221 = pneg %p54
        %p222 = pneg %p51
        %p223 = pneg %p80
        %p224 = pneg %p77
        %p225 = scmp.lt.s32.totalorder %s26, 0
        %s226 = scalar_select %p225, %s26, 0
        %s227 = scalar_lea.vmem %s2, %s226
        %p228 = pneg %p106
        %p229 = pneg %p103
        %p230 = pneg %p134
        %p231 = pneg %p131
        %s232 = sand.u32 %s121, 1
        %s233 = scalar_lea.sflag [#allocation4], %s232
        %s234 = sand.u32 %s121, 1
        %s235 = smul.addr %s234, 8
        %s236 = scalar_lea.vmem [#allocation7], %s235
        %p237 = scmp.lt.s32.totalorder %s26, 0
        %s238 = scalar_select %p237, %s26, 0
        %s239 = scalar_lea.vmem %s2, %s238
        %v240 = vld [vmem:[%s205] sm:$0xff]
        %241 = vadd.xlane.f32.xlu0 %v240
        %v242 = vpop.xlane.xlu0 %241
        %v243 = vmul.f32 %v242, 0.0078125
        %v244 = vsub.f32 %v240, %v243
        %v245 = vmul.f32 %v244, %v244
        %246 = vadd.xlane.f32.xlu0 %v245
        %v247 = vpop.xlane.xlu0 %246
        %v248 = vmul.f32 %v247, 0.007874016
        %v249 = vrsqrt.pop %v248
        %v250 = vmul.f32 %v249, %v248
        %v251 = vmul.f32 %v250, %v249
        %v252 = vmul.f32 0.5, %v251
        %v253 = vsub.f32 1.5, %v252
        %v254 = vmul.f32 %v249, %v253
        %v255 = vmul.f32 %v248, %v254
        %vm256 = vcmp.eq.f32.partialorder %v248, inf
        %v257 = vsel %vm256, %v248, %v255
        %vm258 = vcmp.eq.f32.partialorder %v248, 0.0
        %v259 = vand.u32 %v248, 2147483648
        %v260 = vsel %vm258, %v259, %v257
        %v261 = vadd.f32 %v260, 1e-05
        %v262 = vrcp.pop %v261
        %v263 = vmul.f32 %v244, %v262
        %v264 = vadd.f32 %v263, 1.0
        %v265 = vpack.c.bf16 %v264, %v264
        %v266 = vld [vmem:[#allocation5] sm:$0xf]
        %v267 = vld [vmem:[#allocation5 + $0x4] sm:$0xf]
        %v268 = vld [vmem:[#allocation5 + $0x8] sm:$0xf]
        %v269 = vld [vmem:[#allocation5 + $0xc] sm:$0xf]
        %v270 = vld [vmem:[#allocation5 + $0x10] sm:$0xf]
        %v271 = vld [vmem:[#allocation5 + $0x14] sm:$0xf]
        %v272 = vld [vmem:[#allocation5 + $0x18] sm:$0xf]
        %v273 = vld [vmem:[#allocation5 + $0x1c] sm:$0xf]
        %v274 = vld [vmem:[#allocation5 + $0x20] sm:$0xf]
        %v275 = vld [vmem:[#allocation5 + $0x24] sm:$0xf]
        %v276 = vld [vmem:[#allocation5 + $0x28] sm:$0xf]
        %v277 = vld [vmem:[#allocation5 + $0x2c] sm:$0xf]
        %v278 = vld [vmem:[#allocation5 + $0x30] sm:$0xf]
        %v279 = vld [vmem:[#allocation5 + $0x34] sm:$0xf]
        %v280 = vld [vmem:[#allocation5 + $0x38] sm:$0xf]
        %v281 = vld [vmem:[#allocation5 + $0x3c] sm:$0xf]
        %v282 = vld [vmem:[%s239] sm:$0x1]
        %v284 = vperm.slane %v282, 0
        %v302 = vunpack.c.l.b16 %v266
        %v303 = vunpack.c.l.b16 %v267
        %v304 = vunpack.c.l.b16 %v268
        %v305 = vunpack.c.l.b16 %v269
        %v306 = vunpack.c.l.b16 %v270
        %v307 = vunpack.c.l.b16 %v271
        %v308 = vunpack.c.l.b16 %v272
        %v309 = vunpack.c.l.b16 %v273
        %v310 = vunpack.c.l.b16 %v274
        %v311 = vunpack.c.l.b16 %v275
        %v312 = vunpack.c.l.b16 %v276
        %v313 = vunpack.c.l.b16 %v277
        %v314 = vunpack.c.l.b16 %v278
        %v315 = vunpack.c.l.b16 %v279
        %v316 = vunpack.c.l.b16 %v280
        %v317 = vunpack.c.l.b16 %v281
        %v318 = vpack.c.b16 %v303, %v302
        %v319 = vpack.c.b16 %v305, %v304
        %v320 = vpack.c.b16 %v307, %v306
        %v321 = vpack.c.b16 %v309, %v308
        %v322 = vpack.c.b16 %v311, %v310
        %v323 = vpack.c.b16 %v313, %v312
        %v324 = vpack.c.b16 %v315, %v314
        %v325 = vpack.c.b16 %v317, %v316
        %334 = vmatpush.bf16.msra.mxu0 %v325
        %335 = vmatpush.bf16.msra.mxu0 %v324
        %336 = vmatpush.bf16.msra.mxu0 %v323
        %337 = vmatpush.bf16.msra.mxu0 %v322
        %338 = vmatpush.bf16.msra.mxu0 %v321
        %339 = vmatpush.bf16.msra.mxu0 %v320
        %340 = vmatpush.bf16.msra.mxu0 %v319
        %341 = vmatpush.bf16.msra.mxu0 %v318
        %342 = vmatmul.bf16.gmra.mxu0 %v265
        %v343 = vpop.f32.mrf.mxu0
        %v344 = vadd.f32 %v284, %v343
        %v345 = vpop.f32.mrf.mxu0
        %346 = vdwg.mxu0
        %v347 = vadd.f32 %v240, %v344
        %348 = vst [vmem:[%s236] sm:$0xff] %v347
        %s349 = sand.u32 %s121, 1
        %s350 = scalar_lea.sflag [#allocation4], %s349
        %s351 = sand.u32 %s121, 1
        %s352 = smul.addr %s351, 8
        %s353 = scalar_lea.vmem [#allocation7], %s352
        // Predicated region
        $region41: #{tpu_custom_call.1} parent=31 // pred_check
          %p354 = pneg %p131
        $region42: #{tpu_custom_call.1} parent=31 // pred_check_branch
          %356 = sbr.rel (%p354) target = $region44
        $region43: #{tpu_custom_call.1} parent=31 // pred_region
          %358 = vsyncadd %s350, 0
          %s359 = sadd.s32 %s26, %s25
          %s360 = smul.addr %s359, 8
          %s361 = scalar_lea.hbm %s3, %s360
          %s363 = sshll.u32 %s353, 4
          %s364 = int_to_ptr.vmem [resolvable:$true] %s363
          %s365 = sshll.u32 %s361, 4
          %s366 = int_to_ptr.hbm [resolvable:$true] %s365
          %368 = dma.vmem_to_hbm [thread:$0]  %s364, 128, %s366, %s350
        $region44: #{tpu_custom_call.1} parent=31 // pred_fallthru
          _
      $region32: #{tpu_custom_call.1} parent=5 // pred_fallthru
        _
      %p369 = scmp.le.s32.totalorder 2, %s16
      // Predicated region
      $region45: #{tpu_custom_call.1} parent=5 // pred_check
        %p370 = pneg %p369
      $region46: #{tpu_custom_call.1} parent=5 // pred_check_branch
        %372 = sbr.rel (%p370) target = $region48
      $region47: #{tpu_custom_call.1} parent=5 // pred_region
        %s373 = ssub.s32 %s16, 2
        // Predicated region
        $region49: #{tpu_custom_call.1} parent=47 // pred_check
          %p374 = pneg %p137
        $region50: #{tpu_custom_call.1} parent=47 // pred_check_branch
          %376 = sbr.rel (%p374) target = $region52
        $region51: #{tpu_custom_call.1} parent=47 // pred_region
          %s377 = sand.u32 %s122, 1
          %s378 = scalar_lea.sflag [#allocation4], %s377
          %s379 = sand.u32 %s122, 1
          %s380 = smul.addr %s379, 8
          %s381 = scalar_lea.vmem [#allocation7], %s380
          %383 = dma.done %s378, 128
        $region52: #{tpu_custom_call.1} parent=47 // pred_fallthru
          _
      $region48: #{tpu_custom_call.1} parent=5 // pred_fallthru
        _
    $region6: #{tpu_custom_call.1} parent=1 // loop_footer
      %s20 = sadd.s32 1, %s16
    $region7: #{tpu_custom_call.1} parent=1 // loop_footer_branch
      %15 = sbr.rel target = $region3
    $region8: #{tpu_custom_call.1} parent=1 // loop_exit
      _
    %384 = vsyncpa [#allocation3], 1
    %s385 = scalar_lea.sflag [#allocation3], 1
    %386 = vsyncpa %s385, 1
    %387 = vsyncpa [#allocation6], 1
    %388 = vsyncpa [#allocation4], 1
    %s389 = scalar_lea.sflag [#allocation4], 1
    %390 = vsyncpa %s389, 1

</llo_original>
